<compile_context>
chip_gen: v7x
topology: tpu7x:2x2x1
jax: 0.10.0
libtpu: 0.0.40
codegen_flags: <defaults>
</compile_context>

<pallas_src>
from functools import partial

import jax
import jax.numpy as jnp
from jax import lax
from jax.experimental import pallas as pl
from jax.experimental.pallas import tpu as pltpu

# SAC config constants (standard CleanRL values used by this agent family).
LOG_STD_MIN = -5.0
LOG_STD_MAX = 2.0
HIDDEN = 256


def _round_up(n, m):
    return (n + m - 1) // m * m


def _cdiv(a, b):
    return (a + b - 1) // b


def _sac_actor_kernel(n_action, x_ref, w1_ref, w2_ref, wh_ref, b_ref, out_ref):
    # Packed f32 bias slab: [b1 | b2 | b_heads(padded)] — static, 128-aligned slices.
    b1 = b_ref[:, :HIDDEN]
    b2 = b_ref[:, HIDDEN:2 * HIDDEN]
    bh = b_ref[:, 2 * HIDDEN:]

    # x arrives f32 straight from HBM; cast to bf16 in-register (VPU).
    x = x_ref[...].astype(jnp.bfloat16)                                # [TB, n_state]

    # fc1 + relu (bf16 operands, f32 MXU accumulation)
    h1 = jnp.dot(x, w1_ref[...], preferred_element_type=jnp.float32) + b1
    h1 = jnp.maximum(h1, 0.0).astype(jnp.bfloat16)

    # fc2 + relu
    h2 = jnp.dot(h1, w2_ref[...], preferred_element_type=jnp.float32) + b2
    h2 = jnp.maximum(h2, 0.0).astype(jnp.bfloat16)

    # fused heads: columns [0, n_action) = mean, [n_action, 2*n_action) = logstd
    heads = jnp.dot(h2, wh_ref[...], preferred_element_type=jnp.float32) + bh

    # tanh squash + affine rescale applied only to the logstd columns (lane mask,
    # no sub-128 column slicing). tanh goes to the EUP; padded columns are discarded.
    ls = jnp.tanh(heads)
    ls = LOG_STD_MIN + 0.5 * (LOG_STD_MAX - LOG_STD_MIN) * (ls + 1.0)
    col = lax.broadcasted_iota(jnp.int32, heads.shape, 1)
    # bf16 output slab: halves the dominant HBM write stream.
    out_ref[...] = jnp.where(col < n_action, heads, ls).astype(out_ref.dtype)


def sac_actor_forward(x, params):
    """x: [B, n_state] float32 (or bf16). Returns (mean, log_std), each [B, n_action] f32."""
    B, n_state = x.shape
    n_action = int(params["n_action"])
    head_pad = params["wh"].shape[1]
    bias_len = params["bias"].shape[1]

    # Per-generation batch tile: v5e (1 vst slot, smaller MXU) prefers 512;
    # v6e/v7x amortize the ~0.35us grid-step overhead better with 1024.
    kind = jax.devices()[0].device_kind.lower()
    tb_max = 512 if "v5" in kind else 1024

    if B <= tb_max:
        # Single block equal to the full batch extent — no row padding at all.
        TB = B
        num_blocks = 1
        B_pad = B
    else:
        # Avoid rounding B up by a whole tile: derive TB from cdiv(B, tb_max).
        num_blocks = _cdiv(B, tb_max)
        TB = _round_up(_cdiv(B, num_blocks), 16)
        B_pad = TB * num_blocks

    x_in = x
    if B_pad != B:
        x_in = jnp.pad(x, ((0, B_pad - B), (0, 0)))

    # Only CORE_PARALLEL actually shards grid blocks across v7x's two TensorCores.
    use_core_parallel = ("7" in kind) and (num_blocks >= 2)
    dim_sem = pltpu.CORE_PARALLEL if use_core_parallel else pltpu.PARALLEL

    grid_spec = pltpu.PrefetchScalarGridSpec(
        num_scalar_prefetch=0,
        grid=(num_blocks,),
        in_specs=[
            pl.BlockSpec((TB, n_state), lambda i: (i, 0)),        # x tile (pipelined, f32)
            pl.BlockSpec((n_state, HIDDEN), lambda i: (0, 0)),    # w1 (resident, bf16)
            pl.BlockSpec((HIDDEN, HIDDEN), lambda i: (0, 0)),     # w2 (resident, bf16)
            pl.BlockSpec((HIDDEN, head_pad), lambda i: (0, 0)),   # fused heads (resident, bf16)
            pl.BlockSpec((1, bias_len), lambda i: (0, 0)),        # packed biases (resident, f32)
        ],
        out_specs=pl.BlockSpec((TB, head_pad), lambda i: (i, 0)), # lane-dense bf16 output slab
    )

    out = pl.pallas_call(
        partial(_sac_actor_kernel, n_action),
        out_shape=jax.ShapeDtypeStruct((B_pad, head_pad), jnp.bfloat16),
        grid_spec=grid_spec,
        compiler_params=pltpu.CompilerParams(
            dimension_semantics=(dim_sem,)),
    )(x_in, params["w1"], params["w2"], params["wh"], params["bias"])

    mean = out[:B, :n_action].astype(jnp.float32)
    log_std = out[:B, n_action:2 * n_action].astype(jnp.float32)
    return mean, log_std


def init_params(key, n_state, n_action):
    """Deterministic synthetic init (PyTorch-style uniform fan-in scaling).

    Returns (kernel_params, reference_params). Kernel params hold bf16 weights
    in [in, out] layout with the two heads fused + lane-padded, and all biases
    packed into one f32 slab. Reference params mirror the same bf16 weights so
    the numerical check is apples-to-apples.
    """
    ks = jax.random.split(key, 8)

    def linear(kw, kb, fan_in, fan_out):
        bound = 1.0 / float(fan_in) ** 0.5
        w = jax.random.uniform(kw, (fan_in, fan_out), jnp.float32, -bound, bound)
        b = jax.random.uniform(kb, (1, fan_out), jnp.float32, -bound, bound)
        return w, b

    w1, b1 = linear(ks[0], ks[1], n_state, HIDDEN)
    w2, b2 = linear(ks[2], ks[3], HIDDEN, HIDDEN)
    wm, bm = linear(ks[4], ks[5], HIDDEN, n_action)
    ws, bs = linear(ks[6], ks[7], HIDDEN, n_action)

    head_pad = max(128, _round_up(2 * n_action, 128))
    wh = jnp.zeros((HIDDEN, head_pad), jnp.float32)
    wh = wh.at[:, :n_action].set(wm).at[:, n_action:2 * n_action].set(ws)
    bh = jnp.zeros((1, head_pad), jnp.float32)
    bh = bh.at[:, :n_action].set(bm).at[:, n_action:2 * n_action].set(bs)

    bias = jnp.concatenate([b1, b2, bh], axis=1)              # [1, 2*HIDDEN + head_pad] f32

    params = dict(
        w1=w1.astype(jnp.bfloat16),
        w2=w2.astype(jnp.bfloat16),
        wh=wh.astype(jnp.bfloat16),
        bias=bias,
        n_action=n_action,
    )

    ref = dict(
        w1=params["w1"], b1=b1,
        w2=params["w2"], b2=b2,
        wm=params["wh"][:, :n_action], bm=bm,
        ws=params["wh"][:, n_action:2 * n_action], bs=bs,
    )
    return params, ref


def reference_forward(x, p):
    """Pure-JAX reference with the same dtype path (bf16 operands, f32 accumulation,
    bf16 final rounding to mirror the kernel's bf16 output slab)."""
    def mm(a, b):
        return jnp.dot(a.astype(jnp.bfloat16), b, preferred_element_type=jnp.float32)

    h1 = jax.nn.relu(mm(x, p["w1"]) + p["b1"])
    h2 = jax.nn.relu(mm(h1, p["w2"]) + p["b2"])
    mean = mm(h2, p["wm"]) + p["bm"]
    ls = jnp.tanh(mm(h2, p["ws"]) + p["bs"])
    log_std = LOG_STD_MIN + 0.5 * (LOG_STD_MAX - LOG_STD_MIN) * (ls + 1.0)
    mean = mean.astype(jnp.bfloat16).astype(jnp.float32)
    log_std = log_std.astype(jnp.bfloat16).astype(jnp.float32)
    return mean, log_std


if __name__ == "__main__":
    key = jax.random.PRNGKey(0)
    k_x, k_p = jax.random.split(key)

    B, N_STATE, N_ACTION = 8, 32, 8
    x = jax.random.normal(k_x, (B, N_STATE), jnp.float32)
    params, ref_params = init_params(k_p, N_STATE, N_ACTION)

    mean, log_std = sac_actor_forward(x, params)
    jax.block_until_ready((mean, log_std))

    # sanity check against pure-JAX reference (same bf16 weight / output path)
    ref_mean, ref_ls = reference_forward(x, ref_params)
    assert mean.shape == (B, N_ACTION) and log_std.shape == (B, N_ACTION)
    assert jnp.allclose(mean, ref_mean, atol=2e-2, rtol=2e-2)
    assert jnp.allclose(log_std, ref_ls, atol=2e-2, rtol=2e-2)

    print("KERNEL_OK")
</pallas_src>

<mosaic_0001>
module attributes {stable_mosaic.version = 11 : i64} {
  func.func @_sac_actor_kernel(%arg0: i32, %arg1: memref<8x32xf32, #tpu.memory_space<vmem>>, %arg2: memref<32x256xbf16, #tpu.memory_space<vmem>>, %arg3: memref<256x256xbf16, #tpu.memory_space<vmem>>, %arg4: memref<256x128xbf16, #tpu.memory_space<vmem>>, %arg5: memref<1x640xf32, #tpu.memory_space<vmem>>, %arg6: memref<8x128xbf16, #tpu.memory_space<vmem>>) attributes {dimension_semantics = [#tpu.dimension_semantics<parallel>], iteration_bounds = array<i64: 1>, scalar_prefetch = 0 : i64, scratch_operands = 0 : i64, tpu.core_type = #tpu.core_type<tc>, window_params = [{transform_indices = @transform_0, window_bounds = array<i64: 8, 32>}, {pipeline_mode = #tpu.pipeline_mode<synchronous>, transform_indices = @transform_1, window_bounds = array<i64: 32, 256>}, {pipeline_mode = #tpu.pipeline_mode<synchronous>, transform_indices = @transform_2, window_bounds = array<i64: 256, 256>}, {pipeline_mode = #tpu.pipeline_mode<synchronous>, transform_indices = @transform_3, window_bounds = array<i64: 256, 128>}, {pipeline_mode = #tpu.pipeline_mode<synchronous>, transform_indices = @transform_4, window_bounds = array<i64: 1, 640>}, {transform_indices = @transform_5, window_bounds = array<i64: 8, 128>}]} {
    %c0 = arith.constant 0 : index
    %c0_0 = arith.constant 0 : index
    %0 = vector.load %arg5[%c0, %c0_0] : memref<1x640xf32, #tpu.memory_space<vmem>>, vector<1x256xf32>
    %c0_1 = arith.constant 0 : index
    %c256 = arith.constant 256 : index
    %1 = vector.load %arg5[%c0_1, %c256] : memref<1x640xf32, #tpu.memory_space<vmem>>, vector<1x256xf32>
    %c0_2 = arith.constant 0 : index
    %c512 = arith.constant 512 : index
    %2 = vector.load %arg5[%c0_2, %c512] : memref<1x640xf32, #tpu.memory_space<vmem>>, vector<1x128xf32>
    %c0_3 = arith.constant 0 : index
    %c0_4 = arith.constant 0 : index
    %3 = vector.load %arg1[%c0_3, %c0_4] : memref<8x32xf32, #tpu.memory_space<vmem>>, vector<8x32xf32>
    %4 = arith.truncf %3 : vector<8x32xf32> to vector<8x32xbf16>
    %c0_5 = arith.constant 0 : index
    %c0_6 = arith.constant 0 : index
    %5 = vector.load %arg2[%c0_5, %c0_6] : memref<32x256xbf16, #tpu.memory_space<vmem>>, vector<32x256xbf16>
    %cst = arith.constant dense<0.000000e+00> : vector<8x256xf32>
    %6 = tpu.matmul %4, %5, %cst {dimension_numbers = #tpu.dot_dimension_numbers<[1], [0], [0], [1], [0, 0, 1, 1], [], []>} : vector<8x32xbf16>, vector<32x256xbf16>, vector<8x256xf32> -> vector<8x256xf32>
    %7 = vector.broadcast %0 : vector<1x256xf32> to vector<8x256xf32>
    %8 = arith.addf %6, %7 : vector<8x256xf32>
    %cst_7 = arith.constant 0.000000e+00 : f32
    %9 = vector.broadcast %cst_7 : f32 to vector<8x256xf32>
    %10 = arith.maximumf %8, %9 : vector<8x256xf32>
    %11 = arith.truncf %10 : vector<8x256xf32> to vector<8x256xbf16>
    %c0_8 = arith.constant 0 : index
    %c0_9 = arith.constant 0 : index
    %12 = vector.load %arg3[%c0_8, %c0_9] : memref<256x256xbf16, #tpu.memory_space<vmem>>, vector<256x256xbf16>
    %cst_10 = arith.constant dense<0.000000e+00> : vector<8x256xf32>
    %13 = tpu.matmul %11, %12, %cst_10 {dimension_numbers = #tpu.dot_dimension_numbers<[1], [0], [0], [1], [0, 0, 1, 1], [], []>} : vector<8x256xbf16>, vector<256x256xbf16>, vector<8x256xf32> -> vector<8x256xf32>
    %14 = vector.broadcast %1 : vector<1x256xf32> to vector<8x256xf32>
    %15 = arith.addf %13, %14 : vector<8x256xf32>
    %cst_11 = arith.constant 0.000000e+00 : f32
    %16 = vector.broadcast %cst_11 : f32 to vector<8x256xf32>
    %17 = arith.maximumf %15, %16 : vector<8x256xf32>
    %18 = arith.truncf %17 : vector<8x256xf32> to vector<8x256xbf16>
    %c0_12 = arith.constant 0 : index
    %c0_13 = arith.constant 0 : index
    %19 = vector.load %arg4[%c0_12, %c0_13] : memref<256x128xbf16, #tpu.memory_space<vmem>>, vector<256x128xbf16>
    %cst_14 = arith.constant dense<0.000000e+00> : vector<8x128xf32>
    %20 = tpu.matmul %18, %19, %cst_14 {dimension_numbers = #tpu.dot_dimension_numbers<[1], [0], [0], [1], [0, 0, 1, 1], [], []>} : vector<8x256xbf16>, vector<256x128xbf16>, vector<8x128xf32> -> vector<8x128xf32>
    %21 = vector.broadcast %2 : vector<1x128xf32> to vector<8x128xf32>
    %22 = arith.addf %20, %21 : vector<8x128xf32>
    %23 = math.tanh %22 : vector<8x128xf32>
    %cst_15 = arith.constant 1.000000e+00 : f32
    %24 = vector.broadcast %cst_15 : f32 to vector<8x128xf32>
    %25 = arith.addf %23, %24 : vector<8x128xf32>
    %cst_16 = arith.constant 3.500000e+00 : f32
    %26 = vector.broadcast %cst_16 : f32 to vector<8x128xf32>
    %27 = arith.mulf %26, %25 : vector<8x128xf32>
    %cst_17 = arith.constant -5.000000e+00 : f32
    %28 = vector.broadcast %cst_17 : f32 to vector<8x128xf32>
    %29 = arith.addf %28, %27 : vector<8x128xf32>
    %30 = tpu.iota {dimensions = array<i32: 1>} : vector<8x128xi32>
    %c8_i32 = arith.constant 8 : i32
    %31 = vector.broadcast %c8_i32 : i32 to vector<8x128xi32>
    %32 = arith.cmpi slt, %30, %31 : vector<8x128xi32>
    %33 = arith.select %32, %22, %29 : vector<8x128xi1>, vector<8x128xf32>
    %34 = arith.truncf %33 : vector<8x128xf32> to vector<8x128xbf16>
    %c0_18 = arith.constant 0 : index
    %c0_19 = arith.constant 0 : index
    %35 = vector.load %arg6[%c0_18, %c0_19] : memref<8x128xbf16, #tpu.memory_space<vmem>>, vector<8x128xbf16>
    tpu.vector_store %arg6[%c0_18, %c0_19], %34 {strides = array<i32>} : memref<8x128xbf16, #tpu.memory_space<vmem>>, vector<8x128xbf16>,
    return
  }
  func.func @transform_0(%arg0: i32) -> (i32, i32) {
    %c0_i32 = arith.constant 0 : i32
    %c0_i32_0 = arith.constant 0 : i32
    return %arg0, %c0_i32 : i32, i32
  }
  func.func @transform_1(%arg0: i32) -> (i32, i32) {
    %c0_i32 = arith.constant 0 : i32
    %c0_i32_0 = arith.constant 0 : i32
    %c0_i32_1 = arith.constant 0 : i32
    return %c0_i32, %c0_i32_0 : i32, i32
  }
  func.func @transform_2(%arg0: i32) -> (i32, i32) {
    %c0_i32 = arith.constant 0 : i32
    %c0_i32_0 = arith.constant 0 : i32
    %c0_i32_1 = arith.constant 0 : i32
    return %c0_i32, %c0_i32_0 : i32, i32
  }
  func.func @transform_3(%arg0: i32) -> (i32, i32) {
    %c0_i32 = arith.constant 0 : i32
    %c0_i32_0 = arith.constant 0 : i32
    %c0_i32_1 = arith.constant 0 : i32
    return %c0_i32, %c0_i32_0 : i32, i32
  }
  func.func @transform_4(%arg0: i32) -> (i32, i32) {
    %c0_i32 = arith.constant 0 : i32
    %c0_i32_0 = arith.constant 0 : i32
    %c0_i32_1 = arith.constant 0 : i32
    return %c0_i32, %c0_i32_0 : i32, i32
  }
  func.func @transform_5(%arg0: i32) -> (i32, i32) {
    %c0_i32 = arith.constant 0 : i32
    %c0_i32_0 = arith.constant 0 : i32
    return %arg0, %c0_i32 : i32, i32
  }
}

</mosaic_0001>

<llo_original>
// kernel: tpu_custom_call.1
$region0: #{tpu_custom_call.1}
  #allocation0 [shape = 'u32[]', space=smem, size = 0x4, offset = 0x4, fixed_abs, tag = 'smem constant byte address 0x4 - core index']
  #allocation1 [shape = 'u32[144,128]{1,0:T(1,128)}', space=vmem, size = 0x12000, scoped, tag = 'internal scratch']
  %s0 = inlined_call_operand.hbm [shape: f32[8,32], index: 0, kind: input, shape index: {}]
  %s1 = inlined_call_operand.hbm [shape: bf16[32,256], index: 1, kind: input, shape index: {}]
  %s2 = inlined_call_operand.hbm [shape: bf16[256,256], index: 2, kind: input, shape index: {}]
  %s3 = inlined_call_operand.hbm [shape: bf16[256,128], index: 3, kind: input, shape index: {}]
  %s4 = inlined_call_operand.vmem [shape: f32[1,640], index: 4, kind: input, shape index: {}]
  %s5 = inlined_call_operand.hbm [shape: bf16[8,128], index: 5, kind: output, shape index: {}]
  %s6 = sld [smem:[#allocation0]]
  $region46: #{tpu_custom_call.1} parent=0
    _
  %s8 = ssub.s32 1, %s6
  %s9 = scalar_select 0, %s8, %s6
  $region1: #{tpu_custom_call.1} parent=0
    #allocation2 [shape = 'u8[4096]{0}', space=vmem, size = 0x1000, scoped, tag = 'input window, operand 0, single buffered']
    #allocation3 [shape = 's32[1]{0}', space=sflag, size = 0x4, scoped, tag = 'scoped memory for tpu_custom_call.1']
    #allocation4 [shape = 's32[1]{0}', space=sflag, size = 0x4, scoped, tag = 'scoped memory for tpu_custom_call.1']
    #allocation5 [shape = 'u8[16384]{0}', space=vmem, size = 0x4000, scoped, tag = 'input window, operand 1, single buffered']
    #allocation6 [shape = 's32[1]{0}', space=sflag, size = 0x4, scoped, tag = 'scoped memory for tpu_custom_call.1']
    #allocation7 [shape = 'u8[131072]{0}', space=vmem, size = 0x20000, scoped, tag = 'input window, operand 2, single buffered']
    #allocation8 [shape = 'u8[65536]{0}', space=vmem, size = 0x10000, scoped, tag = 'input window, operand 3, single buffered']
    #allocation9 [shape = 's32[1]{0}', space=sflag, size = 0x4, scoped, tag = 'scoped memory for tpu_custom_call.1']
    #allocation10 [shape = 'u8[2048]{0}', space=vmem, size = 0x800, scoped, tag = 'output window, operand 0, single buffered']
    %10 = vsyncpa [#allocation3], 0
    %11 = vsyncpa [#allocation6], 0
    %12 = vsyncpa [#allocation9], 0
    %13 = vsyncpa [#allocation4], 0
    // Predicated region
    $region2: #{tpu_custom_call.1} parent=1 // pred_check
      _
    $region3: #{tpu_custom_call.1} parent=1 // pred_check_branch
      %15 = sbr.rel (0) target = $region5
    $region4: #{tpu_custom_call.1} parent=1 // pred_region
      %s17 = ssub.s32 128, 128
      %18 = vsyncadd [#allocation3], %s17
      %s20 = sshll.u32 [#allocation2], 4
      %s21 = int_to_ptr.vmem [resolvable:$true] %s20
      %23 = dma.hbm_to_vmem [thread:$0]  %s0, 128, %s21, [#allocation3]
    $region5: #{tpu_custom_call.1} parent=1 // pred_fallthru
      _
    // Predicated region
    $region6: #{tpu_custom_call.1} parent=1 // pred_check
      _
    $region7: #{tpu_custom_call.1} parent=1 // pred_check_branch
      %25 = sbr.rel (0) target = $region9
    $region8: #{tpu_custom_call.1} parent=1 // pred_region
      %s27 = ssub.s32 512, 512
      %28 = vsyncadd [#allocation6], %s27
      %s29 = sshll.u32 [#allocation5], 4
      %s30 = int_to_ptr.vmem [resolvable:$true] %s29
      %35 = dma.hbm_to_vmem [thread:$0]  %s1, 512, %s30, [#allocation6], 128, 128, 8
    $region9: #{tpu_custom_call.1} parent=1 // pred_fallthru
      _
    // Predicated region
    $region10: #{tpu_custom_call.1} parent=1 // pred_check
      _
    $region11: #{tpu_custom_call.1} parent=1 // pred_check_branch
      %37 = sbr.rel (0) target = $region13
    $region12: #{tpu_custom_call.1} parent=1 // pred_region
      %s39 = ssub.s32 4096, 4096
      %40 = vsyncadd [#allocation6], %s39
      %s41 = sshll.u32 [#allocation7], 4
      %s42 = int_to_ptr.vmem [resolvable:$true] %s41
      %47 = dma.hbm_to_vmem [thread:$0]  %s2, 4096, %s42, [#allocation6], 128, 128, 8
    $region13: #{tpu_custom_call.1} parent=1 // pred_fallthru
      _
    // Predicated region
    $region14: #{tpu_custom_call.1} parent=1 // pred_check
      _
    $region15: #{tpu_custom_call.1} parent=1 // pred_check_branch
      %49 = sbr.rel (0) target = $region17
    $region16: #{tpu_custom_call.1} parent=1 // pred_region
      %s51 = ssub.s32 2048, 2048
      %52 = vsyncadd [#allocation9], %s51
      %s53 = sshll.u32 [#allocation8], 4
      %s54 = int_to_ptr.vmem [resolvable:$true] %s53
      %59 = dma.hbm_to_vmem [thread:$0]  %s3, 2048, %s54, [#allocation9], 64, 64, 4
    $region17: #{tpu_custom_call.1} parent=1 // pred_fallthru
      _
    // Predicated region
    $region18: #{tpu_custom_call.1} parent=1 // pred_check
      _
    $region19: #{tpu_custom_call.1} parent=1 // pred_check_branch
      %61 = sbr.rel (0) target = $region21
    $region20: #{tpu_custom_call.1} parent=1 // pred_region
      _
    $region21: #{tpu_custom_call.1} parent=1 // pred_fallthru
      _
    // Predicated region
    $region22: #{tpu_custom_call.1} parent=1 // pred_check
      _
    $region23: #{tpu_custom_call.1} parent=1 // pred_check_branch
      %63 = sbr.rel (0) target = $region25
    $region24: #{tpu_custom_call.1} parent=1 // pred_region
      %64 = dma.done [#allocation3], 128
    $region25: #{tpu_custom_call.1} parent=1 // pred_fallthru
      _
    // Predicated region
    $region26: #{tpu_custom_call.1} parent=1 // pred_check
      _
    $region27: #{tpu_custom_call.1} parent=1 // pred_check_branch
      %66 = sbr.rel (0) target = $region29
    $region28: #{tpu_custom_call.1} parent=1 // pred_region
      %67 = dma.done [#allocation6], 512
    $region29: #{tpu_custom_call.1} parent=1 // pred_fallthru
      _
    // Predicated region
    $region30: #{tpu_custom_call.1} parent=1 // pred_check
      _
    $region31: #{tpu_custom_call.1} parent=1 // pred_check_branch
      %69 = sbr.rel (0) target = $region33
    $region32: #{tpu_custom_call.1} parent=1 // pred_region
      %70 = dma.done [#allocation6], 4096
    $region33: #{tpu_custom_call.1} parent=1 // pred_fallthru
      _
    // Predicated region
    $region34: #{tpu_custom_call.1} parent=1 // pred_check
      _
    $region35: #{tpu_custom_call.1} parent=1 // pred_check_branch
      %72 = sbr.rel (0) target = $region37
    $region36: #{tpu_custom_call.1} parent=1 // pred_region
      %73 = dma.done [#allocation9], 2048
    $region37: #{tpu_custom_call.1} parent=1 // pred_fallthru
      _
    %v75 = vld [vmem:[%s4] sm:$0x3]
    %v76 = vld [vmem:[%s4 + $0x2] sm:$0x3]
    %v77 = vld [vmem:[%s4 + $0x4] sm:$0x1]
    %v78 = vld [vmem:[#allocation2] sm:$0xff]
    %v79 = vpack.c.bf16 %v78, %v78
    %v80 = vld [vmem:[#allocation5] sm:$0xff]
    %v81 = vld [vmem:[#allocation5 + $0x8] sm:$0xff]
    %v82 = vld [vmem:[#allocation5 + $0x10] sm:$0xff]
    %v83 = vld [vmem:[#allocation5 + $0x18] sm:$0xff]
    %v85 = vlaneseq
    %v86 = vshrl.u32 %v85, 7
    %v87 = vsub.s32 0, %v86
    %v88 = vrot.slane %v75, %v87
    %v89 = vlaneseq
    %v90 = vshrl.u32 %v89, 7
    %v91 = vsub.s32 1, %v90
    %v92 = vrot.slane %v75, %v91
    %v99 = vunpack.c.l.b16 %v80
    %v100 = vunpack.c.h.b16 %v80
    %v101 = vunpack.c.l.b16 %v81
    %v102 = vunpack.c.h.b16 %v81
    %v103 = vunpack.c.l.b16 %v82
    %v104 = vunpack.c.h.b16 %v82
    %v105 = vunpack.c.l.b16 %v83
    %v106 = vunpack.c.h.b16 %v83
    %v107 = vpack.c.b16 %v101, %v99
    %v108 = vpack.c.b16 %v102, %v100
    %v109 = vpack.c.b16 %v105, %v103
    %v110 = vpack.c.b16 %v106, %v104
    %vm115 = vcmask 261120
    %v117 = vsel %vm115, %v79, 0
    %119 = vmatprep.subr.bf16.mxu0 %v108
    %120 = vmatpush1.bf16.msra.mxu0 %v107
    %121 = vmatprep.subr.bf16.mxu0 %v110
    %122 = vmatpush1.bf16.msra.mxu0 %v109
    %123 = vmatprep.subr.bf16.mxu0 0
    %124 = vmatpush1.bf16.msra.mxu0 0
    %125 = vmatprep.subr.bf16.mxu0 0
    %126 = vmatpush1.bf16.msra.mxu0 0
    %127 = vmatprep.subr.bf16.mxu0 0
    %128 = vmatpush1.bf16.msra.mxu0 0
    %129 = vmatprep.subr.bf16.mxu0 0
    %130 = vmatpush1.bf16.msra.mxu0 0
    %131 = vmatprep.subr.bf16.mxu0 0
    %132 = vmatpush1.bf16.msra.mxu0 0
    %133 = vmatprep.subr.bf16.mxu0 0
    %134 = vmatpush1.bf16.msra.mxu0 0
    %135 = vmatprep.subr.bf16.mxu0 0
    %136 = vmatpush1.bf16.msra.mxu0 0
    %137 = vmatprep.subr.bf16.mxu0 0
    %138 = vmatpush1.bf16.msra.mxu0 0
    %139 = vmatprep.subr.bf16.mxu0 0
    %140 = vmatpush1.bf16.msra.mxu0 0
    %141 = vmatprep.subr.bf16.mxu0 0
    %142 = vmatpush1.bf16.msra.mxu0 0
    %143 = vmatprep.subr.bf16.mxu0 0
    %144 = vmatpush1.bf16.msra.mxu0 0
    %145 = vmatprep.subr.bf16.mxu0 0
    %146 = vmatpush1.bf16.msra.mxu0 0
    %147 = vmatprep.subr.bf16.mxu0 0
    %148 = vmatpush1.bf16.msra.mxu0 0
    %149 = vmatprep.subr.bf16.mxu0 0
    %150 = vmatpush1.bf16.msra.mxu0 0
    %151 = vmatprep.mubr.bf16.mxu0 0
    %152 = vmatmul.mubr.bf16.gmra.mrb[0].mxu0 %v117
    %v153 = vpop.f32.mrb[0].mxu0
    %v154 = vadd.f32 %v88, %v153
    %v155 = vpop.f32.mrb[0].mxu0
    %v156 = vadd.f32 %v92, %v155
    %v157 = vpop.f32.mrb[0].mxu0
    %v158 = vpop.f32.mrb[0].mxu0
    %159 = vdwg.mxu0
    %v160 = vmax.f32 %v154, 0.0
    %v161 = vmax.f32 %v156, 0.0
    %v162 = vpack.c.bf16 %v160, %v160
    %v163 = vpack.c.bf16 %v161, %v161
    %v164 = vld [vmem:[#allocation7] sm:$0xff]
    %v165 = vld [vmem:[#allocation7 + $0x8] sm:$0xff]
    %v166 = vld [vmem:[#allocation7 + $0x10] sm:$0xff]
    %v167 = vld [vmem:[#allocation7 + $0x18] sm:$0xff]
    %v168 = vld [vmem:[#allocation7 + $0x20] sm:$0xff]
    %v169 = vld [vmem:[#allocation7 + $0x28] sm:$0xff]
    %v170 = vld [vmem:[#allocation7 + $0x30] sm:$0xff]
    %v171 = vld [vmem:[#allocation7 + $0x38] sm:$0xff]
    %v172 = vld [vmem:[#allocation7 + $0x40] sm:$0xff]
    %v173 = vld [vmem:[#allocation7 + $0x48] sm:$0xff]
    %v174 = vld [vmem:[#allocation7 + $0x50] sm:$0xff]
    %v175 = vld [vmem:[#allocation7 + $0x58] sm:$0xff]
    %v176 = vld [vmem:[#allocation7 + $0x60] sm:$0xff]
    %v177 = vld [vmem:[#allocation7 + $0x68] sm:$0xff]
    %v178 = vld [vmem:[#allocation7 + $0x70] sm:$0xff]
    %v179 = vld [vmem:[#allocation7 + $0x78] sm:$0xff]
    %v180 = vld [vmem:[#allocation7 + $0x80] sm:$0xff]
    %v181 = vld [vmem:[#allocation7 + $0x88] sm:$0xff]
    %v182 = vld [vmem:[#allocation7 + $0x90] sm:$0xff]
    %v183 = vld [vmem:[#allocation7 + $0x98] sm:$0xff]
    %v184 = vld [vmem:[#allocation7 + $0xa0] sm:$0xff]
    %v185 = vld [vmem:[#allocation7 + $0xa8] sm:$0xff]
    %v186 = vld [vmem:[#allocation7 + $0xb0] sm:$0xff]
    %v187 = vld [vmem:[#allocation7 + $0xb8] sm:$0xff]
    %v188 = vld [vmem:[#allocation7 + $0xc0] sm:$0xff]
    %v189 = vld [vmem:[#allocation7 + $0xc8] sm:$0xff]
    %v190 = vld [vmem:[#allocation7 + $0xd0] sm:$0xff]
    %v191 = vld [vmem:[#allocation7 + $0xd8] sm:$0xff]
    %v192 = vld [vmem:[#allocation7 + $0xe0] sm:$0xff]
    %v193 = vld [vmem:[#allocation7 + $0xe8] sm:$0xff]
    %v194 = vld [vmem:[#allocation7 + $0xf0] sm:$0xff]
    %v195 = vld [vmem:[#allocation7 + $0xf8] sm:$0xff]
    %v197 = vlaneseq
    %v198 = vshrl.u32 %v197, 7
    %v199 = vsub.s32 0, %v198
    %v200 = vrot.slane %v76, %v199
    %v201 = vlaneseq
    %v202 = vshrl.u32 %v201, 7
    %v203 = vsub.s32 1, %v202
    %v204 = vrot.slane %v76, %v203
    %v239 = vunpack.c.l.b16 %v164
    %v240 = vunpack.c.h.b16 %v164
    %v241 = vunpack.c.l.b16 %v165
    %v242 = vunpack.c.h.b16 %v165
    %v243 = vunpack.c.l.b16 %v166
    %v244 = vunpack.c.h.b16 %v166
    %v245 = vunpack.c.l.b16 %v167
    %v246 = vunpack.c.h.b16 %v167
    %v247 = vunpack.c.l.b16 %v168
    %v248 = vunpack.c.h.b16 %v168
    %v249 = vunpack.c.l.b16 %v169
    %v250 = vunpack.c.h.b16 %v169
    %v251 = vunpack.c.l.b16 %v170
    %v252 = vunpack.c.h.b16 %v170
    %v253 = vunpack.c.l.b16 %v171
    %v254 = vunpack.c.h.b16 %v171
    %v255 = vunpack.c.l.b16 %v172
    %v256 = vunpack.c.h.b16 %v172
    %v257 = vunpack.c.l.b16 %v173
    %v258 = vunpack.c.h.b16 %v173
    %v259 = vunpack.c.l.b16 %v174
    %v260 = vunpack.c.h.b16 %v174
    %v261 = vunpack.c.l.b16 %v175
    %v262 = vunpack.c.h.b16 %v175
    %v263 = vunpack.c.l.b16 %v176
    %v264 = vunpack.c.h.b16 %v176
    %v265 = vunpack.c.l.b16 %v177
    %v266 = vunpack.c.h.b16 %v177
    %v267 = vunpack.c.l.b16 %v178
    %v268 = vunpack.c.h.b16 %v178
    %v269 = vunpack.c.l.b16 %v179
    %v270 = vunpack.c.h.b16 %v179
    %v271 = vunpack.c.l.b16 %v180
    %v272 = vunpack.c.h.b16 %v180
    %v273 = vunpack.c.l.b16 %v181
    %v274 = vunpack.c.h.b16 %v181
    %v275 = vunpack.c.l.b16 %v182
    %v276 = vunpack.c.h.b16 %v182
    %v277 = vunpack.c.l.b16 %v183
    %v278 = vunpack.c.h.b16 %v183
    %v279 = vunpack.c.l.b16 %v184
    %v280 = vunpack.c.h.b16 %v184
    %v281 = vunpack.c.l.b16 %v185
    %v282 = vunpack.c.h.b16 %v185
    %v283 = vunpack.c.l.b16 %v186
    %v284 = vunpack.c.h.b16 %v186
    %v285 = vunpack.c.l.b16 %v187
    %v286 = vunpack.c.h.b16 %v187
    %v287 = vunpack.c.l.b16 %v188
    %v288 = vunpack.c.h.b16 %v188
    %v289 = vunpack.c.l.b16 %v189
    %v290 = vunpack.c.h.b16 %v189
    %v291 = vunpack.c.l.b16 %v190
    %v292 = vunpack.c.h.b16 %v190
    %v293 = vunpack.c.l.b16 %v191
    %v294 = vunpack.c.h.b16 %v191
    %v295 = vunpack.c.l.b16 %v192
    %v296 = vunpack.c.h.b16 %v192
    %v297 = vunpack.c.l.b16 %v193
    %v298 = vunpack.c.h.b16 %v193
    %v299 = vunpack.c.l.b16 %v194
    %v300 = vunpack.c.h.b16 %v194
    %v301 = vunpack.c.l.b16 %v195
    %v302 = vunpack.c.h.b16 %v195
    %v303 = vpack.c.b16 %v241, %v239
    %v304 = vpack.c.b16 %v242, %v240
    %v305 = vpack.c.b16 %v245, %v243
    %v306 = vpack.c.b16 %v246, %v244
    %v307 = vpack.c.b16 %v249, %v247
    %v308 = vpack.c.b16 %v250, %v248
    %v309 = vpack.c.b16 %v253, %v251
    %v310 = vpack.c.b16 %v254, %v252
    %v311 = vpack.c.b16 %v257, %v255
    %v312 = vpack.c.b16 %v258, %v256
    %v313 = vpack.c.b16 %v261, %v259
    %v314 = vpack.c.b16 %v262, %v260
    %v315 = vpack.c.b16 %v265, %v263
    %v316 = vpack.c.b16 %v266, %v264
    %v317 = vpack.c.b16 %v269, %v267
    %v318 = vpack.c.b16 %v270, %v268
    %v319 = vpack.c.b16 %v273, %v271
    %v320 = vpack.c.b16 %v274, %v272
    %v321 = vpack.c.b16 %v277, %v275
    %v322 = vpack.c.b16 %v278, %v276
    %v323 = vpack.c.b16 %v281, %v279
    %v324 = vpack.c.b16 %v282, %v280
    %v325 = vpack.c.b16 %v285, %v283
    %v326 = vpack.c.b16 %v286, %v284
    %v327 = vpack.c.b16 %v289, %v287
    %v328 = vpack.c.b16 %v290, %v288
    %v329 = vpack.c.b16 %v293, %v291
    %v330 = vpack.c.b16 %v294, %v292
    %v331 = vpack.c.b16 %v297, %v295
    %v332 = vpack.c.b16 %v298, %v296
    %v333 = vpack.c.b16 %v301, %v299
    %v334 = vpack.c.b16 %v302, %v300
    %367 = vmatprep.subr.bf16.mxu0 %v304
    %368 = vmatpush1.bf16.msra.mxu0 %v303
    %369 = vmatprep.subr.bf16.mxu0 %v306
    %370 = vmatpush1.bf16.msra.mxu0 %v305
    %371 = vmatprep.subr.bf16.mxu0 %v308
    %372 = vmatpush1.bf16.msra.mxu0 %v307
    %373 = vmatprep.subr.bf16.mxu0 %v310
    %374 = vmatpush1.bf16.msra.mxu0 %v309
    %375 = vmatprep.subr.bf16.mxu0 %v312
    %376 = vmatpush1.bf16.msra.mxu0 %v311
    %377 = vmatprep.subr.bf16.mxu0 %v314
    %378 = vmatpush1.bf16.msra.mxu0 %v313
    %379 = vmatprep.subr.bf16.mxu0 %v316
    %380 = vmatpush1.bf16.msra.mxu0 %v315
    %381 = vmatprep.subr.bf16.mxu0 %v318
    %382 = vmatpush1.bf16.msra.mxu0 %v317
    %383 = vmatprep.subr.bf16.mxu0 %v320
    %384 = vmatpush1.bf16.msra.mxu0 %v319
    %385 = vmatprep.subr.bf16.mxu0 %v322
    %386 = vmatpush1.bf16.msra.mxu0 %v321
    %387 = vmatprep.subr.bf16.mxu0 %v324
    %388 = vmatpush1.bf16.msra.mxu0 %v323
    %389 = vmatprep.subr.bf16.mxu0 %v326
    %390 = vmatpush1.bf16.msra.mxu0 %v325
    %391 = vmatprep.subr.bf16.mxu0 %v328
    %392 = vmatpush1.bf16.msra.mxu0 %v327
    %393 = vmatprep.subr.bf16.mxu0 %v330
    %394 = vmatpush1.bf16.msra.mxu0 %v329
    %395 = vmatprep.subr.bf16.mxu0 %v332
    %396 = vmatpush1.bf16.msra.mxu0 %v331
    %397 = vmatprep.subr.bf16.mxu0 %v334
    %398 = vmatpush1.bf16.msra.mxu0 %v333
    %399 = vmatprep.mubr.bf16.mxu0 %v163
    %400 = vmatmul.mubr.bf16.gmra.mrb[0].mxu0 %v162
    %v401 = vpop.f32.mrb[0].mxu0
    %v402 = vadd.f32 %v200, %v401
    %v403 = vpop.f32.mrb[0].mxu0
    %v404 = vadd.f32 %v204, %v403
    %v405 = vpop.f32.mrb[0].mxu0
    %v406 = vpop.f32.mrb[0].mxu0
    %407 = vdwg.mxu0
    %v408 = vmax.f32 %v402, 0.0
    %v409 = vmax.f32 %v404, 0.0
    %v410 = vpack.c.bf16 %v408, %v408
    %v411 = vpack.c.bf16 %v409, %v409
    %v412 = vld [vmem:[#allocation8] sm:$0xf]
    %v413 = vld [vmem:[#allocation8 + $0x4] sm:$0xf]
    %v414 = vld [vmem:[#allocation8 + $0x8] sm:$0xf]
    %v415 = vld [vmem:[#allocation8 + $0xc] sm:$0xf]
    %v416 = vld [vmem:[#allocation8 + $0x10] sm:$0xf]
    %v417 = vld [vmem:[#allocation8 + $0x14] sm:$0xf]
    %v418 = vld [vmem:[#allocation8 + $0x18] sm:$0xf]
    %v419 = vld [vmem:[#allocation8 + $0x1c] sm:$0xf]
    %v420 = vld [vmem:[#allocation8 + $0x20] sm:$0xf]
    %v421 = vld [vmem:[#allocation8 + $0x24] sm:$0xf]
    %v422 = vld [vmem:[#allocation8 + $0x28] sm:$0xf]
    %v423 = vld [vmem:[#allocation8 + $0x2c] sm:$0xf]
    %v424 = vld [vmem:[#allocation8 + $0x30] sm:$0xf]
    %v425 = vld [vmem:[#allocation8 + $0x34] sm:$0xf]
    %v426 = vld [vmem:[#allocation8 + $0x38] sm:$0xf]
    %v427 = vld [vmem:[#allocation8 + $0x3c] sm:$0xf]
    %v428 = vld [vmem:[#allocation8 + $0x40] sm:$0xf]
    %v429 = vld [vmem:[#allocation8 + $0x44] sm:$0xf]
    %v430 = vld [vmem:[#allocation8 + $0x48] sm:$0xf]
    %v431 = vld [vmem:[#allocation8 + $0x4c] sm:$0xf]
    %v432 = vld [vmem:[#allocation8 + $0x50] sm:$0xf]
    %v433 = vld [vmem:[#allocation8 + $0x54] sm:$0xf]
    %v434 = vld [vmem:[#allocation8 + $0x58] sm:$0xf]
    %v435 = vld [vmem:[#allocation8 + $0x5c] sm:$0xf]
    %v436 = vld [vmem:[#allocation8 + $0x60] sm:$0xf]
    %v437 = vld [vmem:[#allocation8 + $0x64] sm:$0xf]
    %v438 = vld [vmem:[#allocation8 + $0x68] sm:$0xf]
    %v439 = vld [vmem:[#allocation8 + $0x6c] sm:$0xf]
    %v440 = vld [vmem:[#allocation8 + $0x70] sm:$0xf]
    %v441 = vld [vmem:[#allocation8 + $0x74] sm:$0xf]
    %v442 = vld [vmem:[#allocation8 + $0x78] sm:$0xf]
    %v443 = vld [vmem:[#allocation8 + $0x7c] sm:$0xf]
    %v445 = vlaneseq
    %v446 = vshrl.u32 %v445, 7
    %v447 = vsub.s32 0, %v446
    %v448 = vrot.slane %v77, %v447
    %v482 = vunpack.c.l.b16 %v412
    %v483 = vunpack.c.l.b16 %v413
    %v484 = vunpack.c.l.b16 %v414
    %v485 = vunpack.c.l.b16 %v415
    %v486 = vunpack.c.l.b16 %v416
    %v487 = vunpack.c.l.b16 %v417
    %v488 = vunpack.c.l.b16 %v418
    %v489 = vunpack.c.l.b16 %v419
    %v490 = vunpack.c.l.b16 %v420
    %v491 = vunpack.c.l.b16 %v421
    %v492 = vunpack.c.l.b16 %v422
    %v493 = vunpack.c.l.b16 %v423
    %v494 = vunpack.c.l.b16 %v424
    %v495 = vunpack.c.l.b16 %v425
    %v496 = vunpack.c.l.b16 %v426
    %v497 = vunpack.c.l.b16 %v427
    %v498 = vunpack.c.l.b16 %v428
    %v499 = vunpack.c.l.b16 %v429
    %v500 = vunpack.c.l.b16 %v430
    %v501 = vunpack.c.l.b16 %v431
    %v502 = vunpack.c.l.b16 %v432
    %v503 = vunpack.c.l.b16 %v433
    %v504 = vunpack.c.l.b16 %v434
    %v505 = vunpack.c.l.b16 %v435
    %v506 = vunpack.c.l.b16 %v436
    %v507 = vunpack.c.l.b16 %v437
    %v508 = vunpack.c.l.b16 %v438
    %v509 = vunpack.c.l.b16 %v439
    %v510 = vunpack.c.l.b16 %v440
    %v511 = vunpack.c.l.b16 %v441
    %v512 = vunpack.c.l.b16 %v442
    %v513 = vunpack.c.l.b16 %v443
    %v514 = vpack.c.b16 %v483, %v482
    %v515 = vpack.c.b16 %v485, %v484
    %v516 = vpack.c.b16 %v487, %v486
    %v517 = vpack.c.b16 %v489, %v488
    %v518 = vpack.c.b16 %v491, %v490
    %v519 = vpack.c.b16 %v493, %v492
    %v520 = vpack.c.b16 %v495, %v494
    %v521 = vpack.c.b16 %v497, %v496
    %v522 = vpack.c.b16 %v499, %v498
    %v523 = vpack.c.b16 %v501, %v500
    %v524 = vpack.c.b16 %v503, %v502
    %v525 = vpack.c.b16 %v505, %v504
    %v526 = vpack.c.b16 %v507, %v506
    %v527 = vpack.c.b16 %v509, %v508
    %v528 = vpack.c.b16 %v511, %v510
    %v529 = vpack.c.b16 %v513, %v512
    %546 = vmatprep.subr.bf16.mxu0 0
    %547 = vmatpush1.bf16.msra.mxu0 %v514
    %548 = vmatprep.subr.bf16.mxu0 0
    %549 = vmatpush1.bf16.msra.mxu0 %v515
    %550 = vmatprep.subr.bf16.mxu0 0
    %551 = vmatpush1.bf16.msra.mxu0 %v516
    %552 = vmatprep.subr.bf16.mxu0 0
    %553 = vmatpush1.bf16.msra.mxu0 %v517
    %554 = vmatprep.subr.bf16.mxu0 0
    %555 = vmatpush1.bf16.msra.mxu0 %v518
    %556 = vmatprep.subr.bf16.mxu0 0
    %557 = vmatpush1.bf16.msra.mxu0 %v519
    %558 = vmatprep.subr.bf16.mxu0 0
    %559 = vmatpush1.bf16.msra.mxu0 %v520
    %560 = vmatprep.subr.bf16.mxu0 0
    %561 = vmatpush1.bf16.msra.mxu0 %v521
    %562 = vmatprep.subr.bf16.mxu0 0
    %563 = vmatpush1.bf16.msra.mxu0 %v522
    %564 = vmatprep.subr.bf16.mxu0 0
    %565 = vmatpush1.bf16.msra.mxu0 %v523
    %566 = vmatprep.subr.bf16.mxu0 0
    %567 = vmatpush1.bf16.msra.mxu0 %v524
    %568 = vmatprep.subr.bf16.mxu0 0
    %569 = vmatpush1.bf16.msra.mxu0 %v525
    %570 = vmatprep.subr.bf16.mxu0 0
    %571 = vmatpush1.bf16.msra.mxu0 %v526
    %572 = vmatprep.subr.bf16.mxu0 0
    %573 = vmatpush1.bf16.msra.mxu0 %v527
    %574 = vmatprep.subr.bf16.mxu0 0
    %575 = vmatpush1.bf16.msra.mxu0 %v528
    %576 = vmatprep.subr.bf16.mxu0 0
    %577 = vmatpush1.bf16.msra.mxu0 %v529
    %578 = vmatprep.mubr.bf16.mxu0 %v411
    %579 = vmatmul.mubr.bf16.gmra.mrb[0].mxu0 %v410
    %v580 = vpop.f32.mrb[0].mxu0
    %v581 = vadd.f32 %v448, %v580
    %v582 = vpop.f32.mrb[0].mxu0
    %v583 = vpop.f32.mrb[0].mxu0
    %v584 = vpop.f32.mrb[0].mxu0
    %585 = vdwg.mxu0
    %v586 = vtanh.pop %v581
    %v587 = vadd.f32 %v586, 1.0
    %v588 = vmul.f32 %v587, 3.5
    %v589 = vadd.f32 %v588, -5.0
    %v590 = vlaneseq
    %v591 = vand.u32 %v590, 127
    %vm592 = vcmp.lt.s32.totalorder %v591, 8
    %v593 = vsel %vm592, %v581, %v589
    %v594 = vpack.c.bf16 %v593, %v593
    %595 = vst [vmem:[#allocation10] sm:$0xf] %v594
    // Predicated region
    $region38: #{tpu_custom_call.1} parent=1 // pred_check
      _
    $region39: #{tpu_custom_call.1} parent=1 // pred_check_branch
      %597 = sbr.rel (0) target = $region41
    $region40: #{tpu_custom_call.1} parent=1 // pred_region
      %s599 = ssub.s32 64, 64
      %600 = vsyncadd [#allocation4], %s599
      %s602 = sshll.u32 [#allocation10], 4
      %s603 = int_to_ptr.vmem [resolvable:$true] %s602
      %605 = dma.vmem_to_hbm [thread:$0]  %s603, 64, %s5, [#allocation4]
    $region41: #{tpu_custom_call.1} parent=1 // pred_fallthru
      _
    // Predicated region
    $region42: #{tpu_custom_call.1} parent=1 // pred_check
      _
    $region43: #{tpu_custom_call.1} parent=1 // pred_check_branch
      %607 = sbr.rel (0) target = $region45
    $region44: #{tpu_custom_call.1} parent=1 // pred_region
      %608 = dma.done [#allocation4], 64
    $region45: #{tpu_custom_call.1} parent=1 // pred_fallthru
      _
    %609 = vsyncpa [#allocation3], 1
    %610 = vsyncpa [#allocation6], 1
    %611 = vsyncpa [#allocation9], 1
    %612 = vsyncpa [#allocation4], 1

</llo_original>
